<compile_context>
chip_gen: v5e
topology: v5e:2x2
jax: 0.10.0
libtpu: 0.0.40
codegen_flags: <defaults>
</compile_context>

<pallas_src>
import math
from functools import partial

import jax
import jax.numpy as jnp
from jax.experimental import pallas as pl
from jax.experimental.pallas import tpu as pltpu


def _round_up(x, m):
    return ((x + m - 1) // m) * m


# --------------------------------------------------------------------------
# Kernel A: memory concat + cross-attention (bb batch elements per grid step)
# --------------------------------------------------------------------------
def _attn_kernel(fv_ref, ftp_ref, ft_ref, tgt_ref,
                 wq_ref, wk_ref, wv_ref,
                 mem_ref, attn_ref,
                 mem_bf,
                 *, n_v, n_t, dim):
    """fv_ref : (bb, N_v, C) f32   enhanced visual features
       ftp_ref: (bb, N_t, C) f32   enhanced text features
       ft_ref : (bb, N_t, C) f32   original text features
       tgt_ref: (bb, L,   C) bf16  embedded target tokens
       wq/wk/wv: (C, C)     bf16   projection weights (grid-invariant)
       mem_ref: (bb, N_m, C) f32   out: concatenated memory
       attn_ref:(bb, L,   C) bf16  out: attention context (pre vocab head)
       mem_bf : (bb, N_m, C) bf16  VMEM scratch: bf16 copy of memory
    """
    bf16 = jnp.bfloat16
    n_m = n_v + 2 * n_t
    bb = mem_ref.shape[0]
    L = tgt_ref.shape[1]

    fv = fv_ref[...]
    ftp = ftp_ref[...]
    ft = ft_ref[...]

    # memory = cat([F_v', F_t', F_t], dim=1): write straight into the f32 output
    # block; keep a bf16 copy in scratch so K/V never re-read the f32 block.
    mem_ref[:, 0:n_v, :] = fv
    mem_ref[:, n_v:n_v + n_t, :] = ftp
    mem_ref[:, n_v + n_t:n_m, :] = ft
    mem_bf[:, 0:n_v, :] = fv.astype(bf16)
    mem_bf[:, n_v:n_v + n_t, :] = ftp.astype(bf16)
    mem_bf[:, n_v + n_t:n_m, :] = ft.astype(bf16)

    # ---- projections: batch all bb elements into one row-dense matmul ----
    mem2 = mem_bf[...].reshape(bb * n_m, dim)          # (bb*N_m, C) bf16
    tgt2 = tgt_ref[...].reshape(bb * L, dim)           # (bb*L,  C) bf16

    q = jnp.dot(tgt2, wq_ref[...], preferred_element_type=jnp.float32)
    k = jnp.dot(mem2, wk_ref[...], preferred_element_type=jnp.float32)
    v = jnp.dot(mem2, wv_ref[...], preferred_element_type=jnp.float32)

    qb = q.astype(bf16).reshape(bb, L, dim)
    kb = k.astype(bf16).reshape(bb, n_m, dim)
    vb = v.astype(bf16).reshape(bb, n_m, dim)

    # ---- scores: contract feature dims directly (no explicit transpose) ----
    scale = 1.0 / math.sqrt(dim)
    s = jax.lax.dot_general(
        qb, kb,
        dimension_numbers=(((2,), (2,)), ((0,), (0,))),
        preferred_element_type=jnp.float32) * scale    # (bb, L, N_m)

    s_max = jnp.max(s, axis=-1, keepdims=True)
    p = jnp.exp(s - s_max)
    p = p * pl.reciprocal(jnp.sum(p, axis=-1, keepdims=True), approx=False)

    attn = jax.lax.dot_general(
        p.astype(bf16), vb,
        dimension_numbers=(((2,), (1,)), ((0,), (0,))),
        preferred_element_type=jnp.float32)            # (bb, L, C)
    attn_ref[...] = attn.astype(attn_ref.dtype)


# --------------------------------------------------------------------------
# Kernel B: vocab head, rows tiled over (padded) B*L, lane-dense vocab tiles
# --------------------------------------------------------------------------
def _vocab_kernel(attn_ref, wvoc_ref, out_ref):
    """attn_ref: (TM, C)  bf16   wvoc_ref: (C, TV) bf16   out_ref: (TM, TV)"""
    out_ref[...] = jnp.dot(attn_ref[...], wvoc_ref[...],
                           preferred_element_type=jnp.float32
                           ).astype(out_ref.dtype)


def _as_bf16(x):
    return x if x.dtype == jnp.bfloat16 else x.astype(jnp.bfloat16)


def impression_generator(f_v_prime, f_t_prime, f_t, target_ids, params,
                         *, vocab_tile=512, m_tile=256, batch_block=2,
                         logits_dtype=jnp.float32):
    """Pallas wrapper reproducing ImpressionGenerator.forward.

    Returns (memory, output) with
      memory: (B, N_v + 2*N_t, C)
      output: (B, max_len, vocab_size)
    """
    B, N_v, C = f_v_prime.shape
    _, N_t, _ = f_t_prime.shape
    N_m = N_v + 2 * N_t
    L = target_ids.shape[1]
    V = params["w_vocab"].shape[1]

    # Alignment: sublane-aligned segment offsets, lane-dense features.
    # TODO(synk): pad N_v / N_t (e.g. BLIP's N_v=577) to multiples of 8 in a
    #             preprocessing step for real shapes.
    assert N_v % 8 == 0 and N_t % 8 == 0, "N_v/N_t must be multiples of 8"
    assert C % 128 == 0, "C must be a multiple of 128 (lane width)"

    # Weights are persisted in bf16 by init_params; these casts are no-ops then.
    tok_embed = _as_bf16(params["tok_embed"])
    w_q = _as_bf16(params["w_q"])
    w_k = _as_bf16(params["w_k"])
    w_v = _as_bf16(params["w_v"])
    w_vocab = _as_bf16(params["w_vocab"])

    # Glue: embedding gather of target token ids stays in plain JAX.
    tgt_embed = jnp.take(tok_embed, target_ids, axis=0)        # (B, L, C) bf16

    # Batch elements per kernel-A step (largest divisor of B <= batch_block).
    bb = max(d for d in range(1, min(batch_block, B) + 1) if B % d == 0)

    # ---- kernel A: memory concat + cross-attention, grid over batch ----
    kernel_a = partial(_attn_kernel, n_v=N_v, n_t=N_t, dim=C)
    grid_a = pltpu.PrefetchScalarGridSpec(
        num_scalar_prefetch=0,
        grid=(B // bb,),
        in_specs=[
            pl.BlockSpec((bb, N_v, C), lambda b: (b, 0, 0)),
            pl.BlockSpec((bb, N_t, C), lambda b: (b, 0, 0)),
            pl.BlockSpec((bb, N_t, C), lambda b: (b, 0, 0)),
            pl.BlockSpec((bb, L, C), lambda b: (b, 0, 0)),
            # grid-invariant weights: single-buffered to save VMEM
            pl.BlockSpec((C, C), lambda b: (0, 0), pipeline_mode=pl.Buffered(1)),
            pl.BlockSpec((C, C), lambda b: (0, 0), pipeline_mode=pl.Buffered(1)),
            pl.BlockSpec((C, C), lambda b: (0, 0), pipeline_mode=pl.Buffered(1)),
        ],
        out_specs=[
            pl.BlockSpec((bb, N_m, C), lambda b: (b, 0, 0)),
            pl.BlockSpec((bb, L, C), lambda b: (b, 0, 0)),
        ],
        scratch_shapes=[pltpu.VMEM((bb, N_m, C), jnp.bfloat16)],
    )
    memory, attn = pl.pallas_call(
        kernel_a,
        grid_spec=grid_a,
        out_shape=(
            jax.ShapeDtypeStruct((B, N_m, C), f_v_prime.dtype),
            jax.ShapeDtypeStruct((B, L, C), jnp.bfloat16),
        ),
        compiler_params=pltpu.CompilerParams(
            dimension_semantics=("parallel",),
            vmem_limit_bytes=48 * 1024 * 1024),
    )(f_v_prime, f_t_prime, f_t, tgt_embed, w_q, w_k, w_v)

    # ---- kernel B: vocab head, (M, V) tiled with lane-dense vocab tiles ----
    M = B * L
    attn_flat = attn.reshape(M, C)

    tv = _round_up(min(vocab_tile, _round_up(V, 128)), 128)
    tm = _round_up(min(m_tile, _round_up(M, 8)), 8)
    V_pad = _round_up(V, tv)
    M_pad = _round_up(M, tm)

    if V_pad != V:
        # TODO(synk): pre-pad w_vocab once at init time for production vocabs
        #             (e.g. 30522) instead of per forward.
        w_vocab = jnp.pad(w_vocab, ((0, 0), (0, V_pad - V)))
    if M_pad != M:
        attn_flat = jnp.pad(attn_flat, ((0, M_pad - M), (0, 0)))

    num_v = V_pad // tv
    num_m = M_pad // tm

    # Grid order (v, m): each w_vocab tile is DMA'd from HBM exactly once; the
    # small (tm, C) activation tile is re-streamed per vocab tile.
    grid_b = pltpu.PrefetchScalarGridSpec(
        num_scalar_prefetch=0,
        grid=(num_v, num_m),
        in_specs=[
            pl.BlockSpec((tm, C), lambda v, m: (m, 0)),
            pl.BlockSpec((C, tv), lambda v, m: (0, v)),
        ],
        out_specs=pl.BlockSpec((tm, tv), lambda v, m: (m, v)),
    )
    logits = pl.pallas_call(
        _vocab_kernel,
        grid_spec=grid_b,
        out_shape=jax.ShapeDtypeStruct((M_pad, V_pad), logits_dtype),
        compiler_params=pltpu.CompilerParams(
            dimension_semantics=("parallel", "parallel"),
            vmem_limit_bytes=48 * 1024 * 1024),
    )(attn_flat, w_vocab)

    output = logits[:M, :V].reshape(B, L, V)
    return memory, output


def init_params(key, dim, vocab_size):
    """Synthetic decoder-head weights, persisted in bf16 (cast once here)."""
    k1, k2, k3, k4, k5 = jax.random.split(key, 5)
    s = 1.0 / math.sqrt(dim)
    bf16 = jnp.bfloat16
    return {
        "tok_embed": (jax.random.normal(k1, (vocab_size, dim), jnp.float32)
                      * 0.02).astype(bf16),
        "w_q": (jax.random.normal(k2, (dim, dim), jnp.float32) * s).astype(bf16),
        "w_k": (jax.random.normal(k3, (dim, dim), jnp.float32) * s).astype(bf16),
        "w_v": (jax.random.normal(k4, (dim, dim), jnp.float32) * s).astype(bf16),
        "w_vocab": (jax.random.normal(k5, (dim, vocab_size), jnp.float32)
                    * s).astype(bf16),
    }


def _ref_forward(F_v_prime, F_t_prime, F_t, target_ids, params):
    """Plain-JAX reference with matching bf16 compute precision."""
    bf16 = jnp.bfloat16
    C = F_v_prime.shape[-1]
    mem = jnp.concatenate([F_v_prime, F_t_prime, F_t], axis=1)
    tgt = jnp.take(params["tok_embed"].astype(bf16), target_ids, axis=0)
    q = jnp.einsum("blc,cd->bld", tgt, params["w_q"].astype(bf16),
                   preferred_element_type=jnp.float32)
    k = jnp.einsum("bnc,cd->bnd", mem.astype(bf16), params["w_k"].astype(bf16),
                   preferred_element_type=jnp.float32)
    v = jnp.einsum("bnc,cd->bnd", mem.astype(bf16), params["w_v"].astype(bf16),
                   preferred_element_type=jnp.float32)
    s = jnp.einsum("bld,bnd->bln", q.astype(bf16), k.astype(bf16),
                   preferred_element_type=jnp.float32) / math.sqrt(C)
    p = jax.nn.softmax(s, axis=-1)
    attn = jnp.einsum("bln,bnd->bld", p.astype(bf16), v.astype(bf16),
                      preferred_element_type=jnp.float32)
    logits = jnp.einsum("bld,dv->blv", attn.astype(bf16),
                        params["w_vocab"].astype(bf16),
                        preferred_element_type=jnp.float32)
    return mem, logits


if __name__ == "__main__":
    # Small, alignment-friendly shapes: sublane-aligned N_v/N_t, lane-dense C/V.
    B, N_v, N_t, C = 4, 16, 8, 128
    max_len, vocab_size = 8, 1024     # 1024 vocab -> 2 vocab tiles at tv=512

    key = jax.random.PRNGKey(0)
    k_v, k_tp, k_t, k_ids, k_par = jax.random.split(key, 5)

    F_v_prime = jax.random.normal(k_v, (B, N_v, C), jnp.float32)
    F_t_prime = jax.random.normal(k_tp, (B, N_t, C), jnp.float32)
    F_t = jax.random.normal(k_t, (B, N_t, C), jnp.float32)
    target_ids = jax.random.randint(k_ids, (B, max_len), 0, vocab_size, jnp.int32)

    params = init_params(k_par, C, vocab_size)

    memory, output = impression_generator(F_v_prime, F_t_prime, F_t,
                                          target_ids, params)
    jax.block_until_ready((memory, output))

    assert memory.shape == (B, N_v + 2 * N_t, C)
    assert output.shape == (B, max_len, vocab_size)

    # Sanity checks against plain JAX (same bf16 compute precision).
    ref_mem, ref_out = _ref_forward(F_v_prime, F_t_prime, F_t, target_ids, params)
    assert jnp.allclose(memory, ref_mem), "memory concat mismatch"
    assert jnp.allclose(output, ref_out, rtol=3e-2, atol=3e-2), "logits mismatch"

    print("KERNEL_OK")
</pallas_src>

<mosaic_0001>
module attributes {stable_mosaic.version = 11 : i64} {
  func.func @_attn_kernel(%arg0: i32, %arg1: memref<2x16x128xf32, #tpu.memory_space<vmem>>, %arg2: memref<2x8x128xf32, #tpu.memory_space<vmem>>, %arg3: memref<2x8x128xf32, #tpu.memory_space<vmem>>, %arg4: memref<2x8x128xbf16, #tpu.memory_space<vmem>>, %arg5: memref<128x128xbf16, #tpu.memory_space<vmem>>, %arg6: memref<128x128xbf16, #tpu.memory_space<vmem>>, %arg7: memref<128x128xbf16, #tpu.memory_space<vmem>>, %arg8: memref<2x32x128xf32, #tpu.memory_space<vmem>>, %arg9: memref<2x8x128xbf16, #tpu.memory_space<vmem>>, %arg10: memref<2x32x128xbf16, #tpu.memory_space<vmem>>) attributes {dimension_semantics = [#tpu.dimension_semantics<parallel>], iteration_bounds = array<i64: 2>, scalar_prefetch = 0 : i64, scratch_operands = 1 : i64, tpu.core_type = #tpu.core_type<tc>, window_params = [{transform_indices = @transform_0, window_bounds = array<i64: 2, 16, 128>}, {transform_indices = @transform_1, window_bounds = array<i64: 2, 8, 128>}, {transform_indices = @transform_2, window_bounds = array<i64: 2, 8, 128>}, {transform_indices = @transform_3, window_bounds = array<i64: 2, 8, 128>}, {pipeline_mode = #tpu.pipeline_mode<synchronous>, transform_indices = @transform_4, window_bounds = array<i64: 128, 128>}, {pipeline_mode = #tpu.pipeline_mode<synchronous>, transform_indices = @transform_5, window_bounds = array<i64: 128, 128>}, {pipeline_mode = #tpu.pipeline_mode<synchronous>, transform_indices = @transform_6, window_bounds = array<i64: 128, 128>}, {transform_indices = @transform_7, window_bounds = array<i64: 2, 32, 128>}, {transform_indices = @transform_8, window_bounds = array<i64: 2, 8, 128>}]} {
    %c0 = arith.constant 0 : index
    %c0_0 = arith.constant 0 : index
    %c0_1 = arith.constant 0 : index
    %0 = vector.load %arg1[%c0, %c0_0, %c0_1] : memref<2x16x128xf32, #tpu.memory_space<vmem>>, vector<2x16x128xf32>
    %c0_2 = arith.constant 0 : index
    %c0_3 = arith.constant 0 : index
    %c0_4 = arith.constant 0 : index
    %1 = vector.load %arg2[%c0_2, %c0_3, %c0_4] : memref<2x8x128xf32, #tpu.memory_space<vmem>>, vector<2x8x128xf32>
    %c0_5 = arith.constant 0 : index
    %c0_6 = arith.constant 0 : index
    %c0_7 = arith.constant 0 : index
    %2 = vector.load %arg3[%c0_5, %c0_6, %c0_7] : memref<2x8x128xf32, #tpu.memory_space<vmem>>, vector<2x8x128xf32>
    %c0_8 = arith.constant 0 : index
    %c0_9 = arith.constant 0 : index
    %c0_10 = arith.constant 0 : index
    %3 = vector.load %arg8[%c0_8, %c0_9, %c0_10] : memref<2x32x128xf32, #tpu.memory_space<vmem>>, vector<2x16x128xf32>
    tpu.vector_store %arg8[%c0_8, %c0_9, %c0_10], %0 {strides = array<i32>} : memref<2x32x128xf32, #tpu.memory_space<vmem>>, vector<2x16x128xf32>,
    %c0_11 = arith.constant 0 : index
    %c16 = arith.constant 16 : index
    %c0_12 = arith.constant 0 : index
    %4 = vector.load %arg8[%c0_11, %c16, %c0_12] : memref<2x32x128xf32, #tpu.memory_space<vmem>>, vector<2x8x128xf32>
    tpu.vector_store %arg8[%c0_11, %c16, %c0_12], %1 {strides = array<i32>} : memref<2x32x128xf32, #tpu.memory_space<vmem>>, vector<2x8x128xf32>,
    %c0_13 = arith.constant 0 : index
    %c24 = arith.constant 24 : index
    %c0_14 = arith.constant 0 : index
    %5 = vector.load %arg8[%c0_13, %c24, %c0_14] : memref<2x32x128xf32, #tpu.memory_space<vmem>>, vector<2x8x128xf32>
    tpu.vector_store %arg8[%c0_13, %c24, %c0_14], %2 {strides = array<i32>} : memref<2x32x128xf32, #tpu.memory_space<vmem>>, vector<2x8x128xf32>,
    %6 = arith.truncf %0 : vector<2x16x128xf32> to vector<2x16x128xbf16>
    %c0_15 = arith.constant 0 : index
    %c0_16 = arith.constant 0 : index
    %c0_17 = arith.constant 0 : index
    %7 = vector.load %arg10[%c0_15, %c0_16, %c0_17] : memref<2x32x128xbf16, #tpu.memory_space<vmem>>, vector<2x16x128xbf16>
    tpu.vector_store %arg10[%c0_15, %c0_16, %c0_17], %6 {strides = array<i32>} : memref<2x32x128xbf16, #tpu.memory_space<vmem>>, vector<2x16x128xbf16>,
    %8 = arith.truncf %1 : vector<2x8x128xf32> to vector<2x8x128xbf16>
    %c0_18 = arith.constant 0 : index
    %c16_19 = arith.constant 16 : index
    %c0_20 = arith.constant 0 : index
    %9 = vector.load %arg10[%c0_18, %c16_19, %c0_20] : memref<2x32x128xbf16, #tpu.memory_space<vmem>>, vector<2x8x128xbf16>
    tpu.vector_store %arg10[%c0_18, %c16_19, %c0_20], %8 {strides = array<i32>} : memref<2x32x128xbf16, #tpu.memory_space<vmem>>, vector<2x8x128xbf16>,
    %10 = arith.truncf %2 : vector<2x8x128xf32> to vector<2x8x128xbf16>
    %c0_21 = arith.constant 0 : index
    %c24_22 = arith.constant 24 : index
    %c0_23 = arith.constant 0 : index
    %11 = vector.load %arg10[%c0_21, %c24_22, %c0_23] : memref<2x32x128xbf16, #tpu.memory_space<vmem>>, vector<2x8x128xbf16>
    tpu.vector_store %arg10[%c0_21, %c24_22, %c0_23], %10 {strides = array<i32>} : memref<2x32x128xbf16, #tpu.memory_space<vmem>>, vector<2x8x128xbf16>,
    %c0_24 = arith.constant 0 : index
    %c0_25 = arith.constant 0 : index
    %c0_26 = arith.constant 0 : index
    %12 = vector.load %arg10[%c0_24, %c0_25, %c0_26] : memref<2x32x128xbf16, #tpu.memory_space<vmem>>, vector<2x32x128xbf16>
    %13 = vector.shape_cast %12 : vector<2x32x128xbf16> to vector<64x128xbf16>
    %c0_27 = arith.constant 0 : index
    %c0_28 = arith.constant 0 : index
    %c0_29 = arith.constant 0 : index
    %14 = vector.load %arg4[%c0_27, %c0_28, %c0_29] : memref<2x8x128xbf16, #tpu.memory_space<vmem>>, vector<2x8x128xbf16>
    %15 = vector.shape_cast %14 : vector<2x8x128xbf16> to vector<16x128xbf16>
    %c0_30 = arith.constant 0 : index
    %c0_31 = arith.constant 0 : index
    %16 = vector.load %arg5[%c0_30, %c0_31] : memref<128x128xbf16, #tpu.memory_space<vmem>>, vector<128x128xbf16>
    %cst = arith.constant dense<0.000000e+00> : vector<16x128xf32>
    %17 = tpu.matmul %15, %16, %cst {dimension_numbers = #tpu.dot_dimension_numbers<[1], [0], [0], [1], [0, 0, 1, 1], [], []>} : vector<16x128xbf16>, vector<128x128xbf16>, vector<16x128xf32> -> vector<16x128xf32>
    %c0_32 = arith.constant 0 : index
    %c0_33 = arith.constant 0 : index
    %18 = vector.load %arg6[%c0_32, %c0_33] : memref<128x128xbf16, #tpu.memory_space<vmem>>, vector<128x128xbf16>
    %cst_34 = arith.constant dense<0.000000e+00> : vector<64x128xf32>
    %19 = tpu.matmul %13, %18, %cst_34 {dimension_numbers = #tpu.dot_dimension_numbers<[1], [0], [0], [1], [0, 0, 1, 1], [], []>} : vector<64x128xbf16>, vector<128x128xbf16>, vector<64x128xf32> -> vector<64x128xf32>
    %c0_35 = arith.constant 0 : index
    %c0_36 = arith.constant 0 : index
    %20 = vector.load %arg7[%c0_35, %c0_36] : memref<128x128xbf16, #tpu.memory_space<vmem>>, vector<128x128xbf16>
    %cst_37 = arith.constant dense<0.000000e+00> : vector<64x128xf32>
    %21 = tpu.matmul %13, %20, %cst_37 {dimension_numbers = #tpu.dot_dimension_numbers<[1], [0], [0], [1], [0, 0, 1, 1], [], []>} : vector<64x128xbf16>, vector<128x128xbf16>, vector<64x128xf32> -> vector<64x128xf32>
    %22 = arith.truncf %17 : vector<16x128xf32> to vector<16x128xbf16>
    %23 = vector.shape_cast %22 : vector<16x128xbf16> to vector<2x8x128xbf16>
    %24 = arith.truncf %19 : vector<64x128xf32> to vector<64x128xbf16>
    %25 = vector.shape_cast %24 : vector<64x128xbf16> to vector<2x32x128xbf16>
    %26 = arith.truncf %21 : vector<64x128xf32> to vector<64x128xbf16>
    %27 = vector.shape_cast %26 : vector<64x128xbf16> to vector<2x32x128xbf16>
    %cst_38 = arith.constant dense<0.000000e+00> : vector<2x8x32xf32>
    %28 = tpu.matmul %23, %25, %cst_38 {dimension_numbers = #tpu.dot_dimension_numbers<[2], [2], [1], [1], [0, 0, 0, 1, 1, 1], [0], [0]>} : vector<2x8x128xbf16>, vector<2x32x128xbf16>, vector<2x8x32xf32> -> vector<2x8x32xf32>
    %cst_39 = arith.constant 0.0883883461 : f32
    %29 = vector.broadcast %cst_39 : f32 to vector<2x8x32xf32>
    %30 = arith.mulf %28, %29 : vector<2x8x32xf32>
    %cst_40 = arith.constant dense<0xFF800000> : vector<2x8xf32>
    %31 = vector.multi_reduction <maximumf>, %30, %cst_40 [2] : vector<2x8x32xf32> to vector<2x8xf32>
    %32 = vector.shape_cast %31 : vector<2x8xf32> to vector<2x8x1xf32>
    %33 = vector.broadcast %32 : vector<2x8x1xf32> to vector<2x8x32xf32>
    %34 = arith.subf %30, %33 : vector<2x8x32xf32>
    %35 = math.exp %34 : vector<2x8x32xf32>
    %cst_41 = arith.constant dense<0.000000e+00> : vector<2x8xf32>
    %36 = vector.multi_reduction <add>, %35, %cst_41 [2] : vector<2x8x32xf32> to vector<2x8xf32>
    %37 = vector.shape_cast %36 : vector<2x8xf32> to vector<2x8x1xf32>
    %38 = tpu.reciprocal %37 : vector<2x8x1xf32> -> vector<2x8x1xf32>
    %39 = vector.broadcast %38 : vector<2x8x1xf32> to vector<2x8x32xf32>
    %40 = arith.mulf %35, %39 : vector<2x8x32xf32>
    %41 = arith.truncf %40 : vector<2x8x32xf32> to vector<2x8x32xbf16>
    %cst_42 = arith.constant dense<0.000000e+00> : vector<2x8x128xf32>
    %42 = tpu.matmul %41, %27, %cst_42 {dimension_numbers = #tpu.dot_dimension_numbers<[2], [1], [1], [2], [0, 0, 0, 1, 1, 2], [0], [0]>} : vector<2x8x32xbf16>, vector<2x32x128xbf16>, vector<2x8x128xf32> -> vector<2x8x128xf32>
    %43 = arith.truncf %42 : vector<2x8x128xf32> to vector<2x8x128xbf16>
    %c0_43 = arith.constant 0 : index
    %c0_44 = arith.constant 0 : index
    %c0_45 = arith.constant 0 : index
    %44 = vector.load %arg9[%c0_43, %c0_44, %c0_45] : memref<2x8x128xbf16, #tpu.memory_space<vmem>>, vector<2x8x128xbf16>
    tpu.vector_store %arg9[%c0_43, %c0_44, %c0_45], %43 {strides = array<i32>} : memref<2x8x128xbf16, #tpu.memory_space<vmem>>, vector<2x8x128xbf16>,
    return
  }
  func.func @transform_0(%arg0: i32) -> (i32, i32, i32) {
    %c0_i32 = arith.constant 0 : i32
    %c0_i32_0 = arith.constant 0 : i32
    %c0_i32_1 = arith.constant 0 : i32
    return %arg0, %c0_i32, %c0_i32_0 : i32, i32, i32
  }
  func.func @transform_1(%arg0: i32) -> (i32, i32, i32) {
    %c0_i32 = arith.constant 0 : i32
    %c0_i32_0 = arith.constant 0 : i32
    %c0_i32_1 = arith.constant 0 : i32
    return %arg0, %c0_i32, %c0_i32_0 : i32, i32, i32
  }
  func.func @transform_2(%arg0: i32) -> (i32, i32, i32) {
    %c0_i32 = arith.constant 0 : i32
    %c0_i32_0 = arith.constant 0 : i32
    %c0_i32_1 = arith.constant 0 : i32
    return %arg0, %c0_i32, %c0_i32_0 : i32, i32, i32
  }
  func.func @transform_3(%arg0: i32) -> (i32, i32, i32) {
    %c0_i32 = arith.constant 0 : i32
    %c0_i32_0 = arith.constant 0 : i32
    %c0_i32_1 = arith.constant 0 : i32
    return %arg0, %c0_i32, %c0_i32_0 : i32, i32, i32
  }
  func.func @transform_4(%arg0: i32) -> (i32, i32) {
    %c0_i32 = arith.constant 0 : i32
    %c0_i32_0 = arith.constant 0 : i32
    %c0_i32_1 = arith.constant 0 : i32
    return %c0_i32, %c0_i32_0 : i32, i32
  }
  func.func @transform_5(%arg0: i32) -> (i32, i32) {
    %c0_i32 = arith.constant 0 : i32
    %c0_i32_0 = arith.constant 0 : i32
    %c0_i32_1 = arith.constant 0 : i32
    return %c0_i32, %c0_i32_0 : i32, i32
  }
  func.func @transform_6(%arg0: i32) -> (i32, i32) {
    %c0_i32 = arith.constant 0 : i32
    %c0_i32_0 = arith.constant 0 : i32
    %c0_i32_1 = arith.constant 0 : i32
    return %c0_i32, %c0_i32_0 : i32, i32
  }
  func.func @transform_7(%arg0: i32) -> (i32, i32, i32) {
    %c0_i32 = arith.constant 0 : i32
    %c0_i32_0 = arith.constant 0 : i32
    %c0_i32_1 = arith.constant 0 : i32
    return %arg0, %c0_i32, %c0_i32_0 : i32, i32, i32
  }
  func.func @transform_8(%arg0: i32) -> (i32, i32, i32) {
    %c0_i32 = arith.constant 0 : i32
    %c0_i32_0 = arith.constant 0 : i32
    %c0_i32_1 = arith.constant 0 : i32
    return %arg0, %c0_i32, %c0_i32_0 : i32, i32, i32
  }
}

</mosaic_0001>

<llo_original>
// kernel: tpu_custom_call.1
$region0: #{tpu_custom_call.1}
  #allocation0 [shape = 'u32[]', space=smem, size = 0x4, offset = 0x4, fixed_abs, tag = 'smem constant byte address 0x4 - core index']
  #allocation1 [shape = 'u32[72,128]{1,0:T(1,128)}', space=vmem, size = 0x9000, scoped, tag = 'internal scratch']
  #allocation2 [shape = 'bf16[2,32,128]{2,1,0:T(8,128)(2,1)}', space=vmem, size = 0x4000, scoped, tag = 'scratch operand']
  %s0 = inlined_call_operand.hbm [shape: f32[4,16,128], index: 0, kind: input, shape index: {}]
  %s1 = inlined_call_operand.hbm [shape: f32[4,8,128], index: 1, kind: input, shape index: {}]
  %s2 = inlined_call_operand.hbm [shape: f32[4,8,128], index: 2, kind: input, shape index: {}]
  %s3 = inlined_call_operand.hbm [shape: bf16[4,8,128], index: 3, kind: input, shape index: {}]
  %s4 = inlined_call_operand.hbm [shape: bf16[128,128], index: 4, kind: input, shape index: {}]
  %s5 = inlined_call_operand.hbm [shape: bf16[128,128], index: 5, kind: input, shape index: {}]
  %s6 = inlined_call_operand.hbm [shape: bf16[128,128], index: 6, kind: input, shape index: {}]
  %s7 = inlined_call_operand.hbm [shape: f32[4,32,128], index: 7, kind: output, shape index: {0}]
  %s8 = inlined_call_operand.hbm [shape: bf16[4,8,128], index: 8, kind: output, shape index: {1}]
  %9 = xla_tuple %s7, %s8
  %s10 = sld [smem:[#allocation0]]
  $region97: #{tpu_custom_call.1} parent=0
    _
  %s12 = ssub.s32 1, %s10
  %s13 = scalar_select 0, %s12, %s10
  $region1: #{tpu_custom_call.1} parent=0
    #allocation3 [shape = 'u8[32768]{0}', space=vmem, size = 0x8000, scoped, tag = 'input window, operand 0']
    #allocation4 [shape = 's32[2]{0}', space=sflag, size = 0x8, scoped, tag = 'scoped memory for tpu_custom_call.1']
    #allocation5 [shape = 's32[2]{0}', space=sflag, size = 0x8, scoped, tag = 'scoped memory for tpu_custom_call.1']
    #allocation6 [shape = 'u8[16384]{0}', space=vmem, size = 0x4000, scoped, tag = 'input window, operand 1']
    #allocation7 [shape = 's32[2]{0}', space=sflag, size = 0x8, scoped, tag = 'scoped memory for tpu_custom_call.1']
    #allocation8 [shape = 'u8[16384]{0}', space=vmem, size = 0x4000, scoped, tag = 'input window, operand 2']
    #allocation9 [shape = 'u8[8192]{0}', space=vmem, size = 0x2000, scoped, tag = 'input window, operand 3']
    #allocation10 [shape = 's32[2]{0}', space=sflag, size = 0x8, scoped, tag = 'scoped memory for tpu_custom_call.1']
    #allocation11 [shape = 'u8[32768]{0}', space=vmem, size = 0x8000, scoped, tag = 'input window, operand 4, single buffered']
    #allocation12 [shape = 'u8[32768]{0}', space=vmem, size = 0x8000, scoped, tag = 'input window, operand 5, single buffered']
    #allocation13 [shape = 's32[1]{0}', space=sflag, size = 0x4, scoped, tag = 'scoped memory for tpu_custom_call.1']
    #allocation14 [shape = 'u8[32768]{0}', space=vmem, size = 0x8000, scoped, tag = 'input window, operand 6, single buffered']
    #allocation15 [shape = 'u8[65536]{0}', space=vmem, size = 0x10000, scoped, tag = 'output window, operand 0']
    #allocation16 [shape = 'u8[8192]{0}', space=vmem, size = 0x2000, scoped, tag = 'output window, operand 1']
    #allocation17 [shape = 's32[2]{0}', space=sflag, size = 0x8, scoped, tag = 'scoped memory for tpu_custom_call.1']
    %14 = vsyncpa [#allocation4], 0
    %s15 = scalar_lea.sflag [#allocation4], 1
    %16 = vsyncpa %s15, 0
    %17 = vsyncpa [#allocation7], 0
    %s18 = scalar_lea.sflag [#allocation7], 1
    %19 = vsyncpa %s18, 0
    %20 = vsyncpa [#allocation10], 0
    %s21 = scalar_lea.sflag [#allocation10], 1
    %22 = vsyncpa %s21, 0
    %23 = vsyncpa [#allocation13], 0
    %24 = vsyncpa [#allocation5], 0
    %s25 = scalar_lea.sflag [#allocation5], 1
    %26 = vsyncpa %s25, 0
    %27 = vsyncpa [#allocation17], 0
    %s28 = scalar_lea.sflag [#allocation17], 1
    %29 = vsyncpa %s28, 0
    loop: start=0, step=1, limit=4
    $region2: #{tpu_custom_call.1} parent=1 // loop_pre_header
      _
    $region3: #{tpu_custom_call.1} parent=1 // loop_header
      %s31 = sphi 0, %s35
      %p32 = scmp.ge.s32.totalorder %s31, 4
      %s41 = sphi 0, %s43
      %s44 = sphi 0, %s41
      %s45 = sphi 0, %s44
      %s61 = sphi 0, %s45
      %s67 = sphi 0, %s69
      %s70 = sphi 0, %s67
      %s71 = sphi 0, %s70
      %s87 = sphi 0, %s71
      %s93 = sphi 0, %s95
      %s96 = sphi 0, %s93
      %s97 = sphi 0, %s96
      %s113 = sphi 0, %s97
      %s119 = sphi 0, %s121
      %s122 = sphi 0, %s119
      %s123 = sphi 0, %s122
      %s139 = sphi 0, %s123
      %s143 = sphi 0, %s143
      %s145 = sphi 0, %s143
      %s146 = sphi 0, %s145
      %s160 = sphi 0, %s146
      %s164 = sphi 0, %s164
      %s166 = sphi 0, %s164
      %s167 = sphi 0, %s166
      %s181 = sphi 0, %s167
      %s185 = sphi 0, %s185
      %s187 = sphi 0, %s185
      %s188 = sphi 0, %s187
      %s202 = sphi 0, %s188
      %s208 = sphi 0, %s210
      %s211 = sphi 0, %s208
      %s212 = sphi 0, %s211
      %s228 = sphi 0, %s212
      %s234 = sphi 0, %s236
      %s237 = sphi 0, %s234
      %s238 = sphi 0, %s237
      %s254 = sphi 0, %s238
    $region4: #{tpu_custom_call.1} parent=1 // loop_header_branch
      %34 = sbr.rel (%p32) target = $region8
    $region5: #{tpu_custom_call.1} parent=1 // loop_body
      %s36 = ssub.s32 %s31, 1
      %s37 = ssub.s32 %s31, 2
      %s38 = sadd.s32 %s31, 1
      %s39 = ssub.s32 %s31, %s38
      %p40 = scmp.eq.s32.totalorder %s39, 0
      %s42 = sadd.s32 %s41, 1
      %s43 = scalar_select %p40, %s41, %s42
      %p46 = pneg %p40
      %p47 = scmp.eq.s32.totalorder %s31, 1
      %p48 = por %p46, %p47
      %p49 = scmp.ne.s32.totalorder %s41, %s44
      %p50 = scmp.eq.s32.totalorder %s31, 0
      %p51 = por %p49, %p50
      %p52 = scmp.ne.s32.totalorder %s41, %s44
      %p53 = scmp.eq.s32.totalorder %s36, 1
      %p54 = por %p52, %p53
      %p55 = scmp.ne.s32.totalorder %s44, %s45
      %p56 = scmp.eq.s32.totalorder %s36, 0
      %p57 = por %p55, %p56
      %p58 = scmp.ne.s32.totalorder %s44, %s45
      %p59 = scmp.eq.s32.totalorder %s37, 1
      %p60 = por %p58, %p59
      %p62 = scmp.ne.s32.totalorder %s45, %s61
      %p63 = scmp.eq.s32.totalorder %s37, 0
      %p64 = por %p62, %p63
      %s65 = ssub.s32 %s31, %s38
      %p66 = scmp.eq.s32.totalorder %s65, 0
      %s68 = sadd.s32 %s67, 1
      %s69 = scalar_select %p66, %s67, %s68
      %p72 = pneg %p66
      %p73 = scmp.eq.s32.totalorder %s31, 1
      %p74 = por %p72, %p73
      %p75 = scmp.ne.s32.totalorder %s67, %s70
      %p76 = scmp.eq.s32.totalorder %s31, 0
      %p77 = por %p75, %p76
      %p78 = scmp.ne.s32.totalorder %s67, %s70
      %p79 = scmp.eq.s32.totalorder %s36, 1
      %p80 = por %p78, %p79
      %p81 = scmp.ne.s32.totalorder %s70, %s71
      %p82 = scmp.eq.s32.totalorder %s36, 0
      %p83 = por %p81, %p82
      %p84 = scmp.ne.s32.totalorder %s70, %s71
      %p85 = scmp.eq.s32.totalorder %s37, 1
      %p86 = por %p84, %p85
      %p88 = scmp.ne.s32.totalorder %s71, %s87
      %p89 = scmp.eq.s32.totalorder %s37, 0
      %p90 = por %p88, %p89
      %s91 = ssub.s32 %s31, %s38
      %p92 = scmp.eq.s32.totalorder %s91, 0
      %s94 = sadd.s32 %s93, 1
      %s95 = scalar_select %p92, %s93, %s94
      %p98 = pneg %p92
      %p99 = scmp.eq.s32.totalorder %s31, 1
      %p100 = por %p98, %p99
      %p101 = scmp.ne.s32.totalorder %s93, %s96
      %p102 = scmp.eq.s32.totalorder %s31, 0
      %p103 = por %p101, %p102
      %p104 = scmp.ne.s32.totalorder %s93, %s96
      %p105 = scmp.eq.s32.totalorder %s36, 1
      %p106 = por %p104, %p105
      %p107 = scmp.ne.s32.totalorder %s96, %s97
      %p108 = scmp.eq.s32.totalorder %s36, 0
      %p109 = por %p107, %p108
      %p110 = scmp.ne.s32.totalorder %s96, %s97
      %p111 = scmp.eq.s32.totalorder %s37, 1
      %p112 = por %p110, %p111
      %p114 = scmp.ne.s32.totalorder %s97, %s113
      %p115 = scmp.eq.s32.totalorder %s37, 0
      %p116 = por %p114, %p115
      %s117 = ssub.s32 %s31, %s38
      %p118 = scmp.eq.s32.totalorder %s117, 0
      %s120 = sadd.s32 %s119, 1
      %s121 = scalar_select %p118, %s119, %s120
      %p124 = pneg %p118
      %p125 = scmp.eq.s32.totalorder %s31, 1
      %p126 = por %p124, %p125
      %p127 = scmp.ne.s32.totalorder %s119, %s122
      %p128 = scmp.eq.s32.totalorder %s31, 0
      %p129 = por %p127, %p128
      %p130 = scmp.ne.s32.totalorder %s119, %s122
      %p131 = scmp.eq.s32.totalorder %s36, 1
      %p132 = por %p130, %p131
      %p133 = scmp.ne.s32.totalorder %s122, %s123
      %p134 = scmp.eq.s32.totalorder %s36, 0
      %p135 = por %p133, %p134
      %p136 = scmp.ne.s32.totalorder %s122, %s123
      %p137 = scmp.eq.s32.totalorder %s37, 1
      %p138 = por %p136, %p137
      %p140 = scmp.ne.s32.totalorder %s123, %s139
      %p141 = scmp.eq.s32.totalorder %s37, 0
      %p142 = por %p140, %p141
      %s144 = sadd.s32 %s143, 1
      %p147 = scmp.eq.s32.totalorder %s31, 1
      %p148 = scmp.ne.s32.totalorder %s143, %s145
      %p149 = scmp.eq.s32.totalorder %s31, 0
      %p150 = por %p148, %p149
      %p151 = scmp.ne.s32.totalorder %s143, %s145
      %p152 = scmp.eq.s32.totalorder %s36, 1
      %p153 = por %p151, %p152
      %p154 = scmp.ne.s32.totalorder %s145, %s146
      %p155 = scmp.eq.s32.totalorder %s36, 0
      %p156 = por %p154, %p155
      %p157 = scmp.ne.s32.totalorder %s145, %s146
      %p158 = scmp.eq.s32.totalorder %s37, 1
      %p159 = por %p157, %p158
      %p161 = scmp.ne.s32.totalorder %s146, %s160
      %p162 = scmp.eq.s32.totalorder %s37, 0
      %p163 = por %p161, %p162
      %s165 = sadd.s32 %s164, 1
      %p168 = scmp.eq.s32.totalorder %s31, 1
      %p169 = scmp.ne.s32.totalorder %s164, %s166
      %p170 = scmp.eq.s32.totalorder %s31, 0
      %p171 = por %p169, %p170
      %p172 = scmp.ne.s32.totalorder %s164, %s166
      %p173 = scmp.eq.s32.totalorder %s36, 1
      %p174 = por %p172, %p173
      %p175 = scmp.ne.s32.totalorder %s166, %s167
      %p176 = scmp.eq.s32.totalorder %s36, 0
      %p177 = por %p175, %p176
      %p178 = scmp.ne.s32.totalorder %s166, %s167
      %p179 = scmp.eq.s32.totalorder %s37, 1
      %p180 = por %p178, %p179
      %p182 = scmp.ne.s32.totalorder %s167, %s181
      %p183 = scmp.eq.s32.totalorder %s37, 0
      %p184 = por %p182, %p183
      %s186 = sadd.s32 %s185, 1
      %p189 = scmp.eq.s32.totalorder %s31, 1
      %p190 = scmp.ne.s32.totalorder %s185, %s187
      %p191 = scmp.eq.s32.totalorder %s31, 0
      %p192 = por %p190, %p191
      %p193 = scmp.ne.s32.totalorder %s185, %s187
      %p194 = scmp.eq.s32.totalorder %s36, 1
      %p195 = por %p193, %p194
      %p196 = scmp.ne.s32.totalorder %s187, %s188
      %p197 = scmp.eq.s32.totalorder %s36, 0
      %p198 = por %p196, %p197
      %p199 = scmp.ne.s32.totalorder %s187, %s188
      %p200 = scmp.eq.s32.totalorder %s37, 1
      %p201 = por %p199, %p200
      %p203 = scmp.ne.s32.totalorder %s188, %s202
      %p204 = scmp.eq.s32.totalorder %s37, 0
      %p205 = por %p203, %p204
      %s206 = ssub.s32 %s31, %s38
      %p207 = scmp.eq.s32.totalorder %s206, 0
      %s209 = sadd.s32 %s208, 1
      %s210 = scalar_select %p207, %s208, %s209
      %p213 = pneg %p207
      %p214 = scmp.eq.s32.totalorder %s31, 1
      %p215 = por %p213, %p214
      %p216 = scmp.ne.s32.totalorder %s208, %s211
      %p217 = scmp.eq.s32.totalorder %s31, 0
      %p218 = por %p216, %p217
      %p219 = scmp.ne.s32.totalorder %s208, %s211
      %p220 = scmp.eq.s32.totalorder %s36, 1
      %p221 = por %p219, %p220
      %p222 = scmp.ne.s32.totalorder %s211, %s212
      %p223 = scmp.eq.s32.totalorder %s36, 0
      %p224 = por %p222, %p223
      %p225 = scmp.ne.s32.totalorder %s211, %s212
      %p226 = scmp.eq.s32.totalorder %s37, 1
      %p227 = por %p225, %p226
      %p229 = scmp.ne.s32.totalorder %s212, %s228
      %p230 = scmp.eq.s32.totalorder %s37, 0
      %p231 = por %p229, %p230
      %s232 = ssub.s32 %s31, %s38
      %p233 = scmp.eq.s32.totalorder %s232, 0
      %s235 = sadd.s32 %s234, 1
      %s236 = scalar_select %p233, %s234, %s235
      %p239 = pneg %p233
      %p240 = scmp.eq.s32.totalorder %s31, 1
      %p241 = por %p239, %p240
      %p242 = scmp.ne.s32.totalorder %s234, %s237
      %p243 = scmp.eq.s32.totalorder %s31, 0
      %p244 = por %p242, %p243
      %p245 = scmp.ne.s32.totalorder %s234, %s237
      %p246 = scmp.eq.s32.totalorder %s36, 1
      %p247 = por %p245, %p246
      %p248 = scmp.ne.s32.totalorder %s237, %s238
      %p249 = scmp.eq.s32.totalorder %s36, 0
      %p250 = por %p248, %p249
      %p251 = scmp.ne.s32.totalorder %s237, %s238
      %p252 = scmp.eq.s32.totalorder %s37, 1
      %p253 = por %p251, %p252
      %p255 = scmp.ne.s32.totalorder %s238, %s254
      %p256 = scmp.eq.s32.totalorder %s37, 0
      %p257 = por %p255, %p256
      %p258 = scmp.le.s32.totalorder 1, %s31
      %p259 = scmp.lt.s32.totalorder %s31, 3
      %p260 = pnand %p258, %p259
      %p261 = pneg %p260
      // Predicated region
      $region9: #{tpu_custom_call.1} parent=5 // pred_check
        _
      $region10: #{tpu_custom_call.1} parent=5 // pred_check_branch
        %263 = sbr.rel (%p260) target = $region12
      $region11: #{tpu_custom_call.1} parent=5 // pred_region
        %s264 = ssub.s32 %s31, 1
        // Predicated region
        $region13: #{tpu_custom_call.1} parent=11 // pred_check
          %p265 = pneg %p156
        $region14: #{tpu_custom_call.1} parent=11 // pred_check_branch
          %267 = sbr.rel (%p265) target = $region16
        $region15: #{tpu_custom_call.1} parent=11 // pred_region
          %269 = vsyncadd [#allocation10], 0
          %s270 = sshll.u32 %s4, 4
          %s271 = int_to_ptr.hbm [resolvable:$true] %s270
          %s272 = sshll.u32 [#allocation11], 4
          %s273 = int_to_ptr.vmem [resolvable:$true] %s272
          %278 = dma.hbm_to_vmem [thread:$0]  %s271, 1024, %s273, [#allocation10], 64, 64, 4
        $region16: #{tpu_custom_call.1} parent=11 // pred_fallthru
          _
        // Predicated region
        $region17: #{tpu_custom_call.1} parent=11 // pred_check
          %p279 = pneg %p177
        $region18: #{tpu_custom_call.1} parent=11 // pred_check_branch
          %281 = sbr.rel (%p279) target = $region20
        $region19: #{tpu_custom_call.1} parent=11 // pred_region
          %283 = vsyncadd [#allocation13], 0
          %s284 = sshll.u32 %s5, 4
          %s285 = int_to_ptr.hbm [resolvable:$true] %s284
          %s286 = sshll.u32 [#allocation12], 4
          %s287 = int_to_ptr.vmem [resolvable:$true] %s286
          %292 = dma.hbm_to_vmem [thread:$0]  %s285, 1024, %s287, [#allocation13], 64, 64, 4
        $region20: #{tpu_custom_call.1} parent=11 // pred_fallthru
          _
        // Predicated region
        $region21: #{tpu_custom_call.1} parent=11 // pred_check
          %p293 = pneg %p198
        $region22: #{tpu_custom_call.1} parent=11 // pred_check_branch
          %295 = sbr.rel (%p293) target = $region24
        $region23: #{tpu_custom_call.1} parent=11 // pred_region
          %297 = vsyncadd [#allocation13], 0
          %s298 = sshll.u32 %s6, 4
          %s299 = int_to_ptr.hbm [resolvable:$true] %s298
          %s300 = sshll.u32 [#allocation14], 4
          %s301 = int_to_ptr.vmem [resolvable:$true] %s300
          %306 = dma.hbm_to_vmem [thread:$0]  %s299, 1024, %s301, [#allocation13], 64, 64, 4
        $region24: #{tpu_custom_call.1} parent=11 // pred_fallthru
          _
      $region12: #{tpu_custom_call.1} parent=5 // pred_fallthru
        _
      %p307 = scmp.lt.s32.totalorder %s31, 2
      // Predicated region
      $region25: #{tpu_custom_call.1} parent=5 // pred_check
        %p308 = pneg %p307
      $region26: #{tpu_custom_call.1} parent=5 // pred_check_branch
        %310 = sbr.rel (%p308) target = $region28
      $region27: #{tpu_custom_call.1} parent=5 // pred_region
        // Predicated region
        $region29: #{tpu_custom_call.1} parent=27 // pred_check
          %p311 = pneg %p51
        $region30: #{tpu_custom_call.1} parent=27 // pred_check_branch
          %313 = sbr.rel (%p311) target = $region32
        $region31: #{tpu_custom_call.1} parent=27 // pred_region
          %s314 = sand.u32 %s41, 1
          %s315 = scalar_lea.sflag [#allocation4], %s314
          %s316 = sand.u32 %s41, 1
          %s317 = smul.addr %s316, 32
          %s318 = scalar_lea.vmem [#allocation3], %s317
          %s319 = smul.u32 2, %s31
          %321 = vsyncadd %s315, 0
          %s322 = smul.addr %s319, 2
          %s323 = smul.addr %s322, 8
          %s324 = scalar_lea.hbm %s0, %s323
          %s325 = sshll.u32 %s324, 4
          %s326 = int_to_ptr.hbm [resolvable:$true] %s325
          %s327 = sshll.u32 %s318, 4
          %s328 = int_to_ptr.vmem [resolvable:$true] %s327
          %333 = dma.hbm_to_vmem [thread:$0]  %s326, 512, %s328, %s315, 128, 128, 8
        $region32: #{tpu_custom_call.1} parent=27 // pred_fallthru
          _
        // Predicated region
        $region33: #{tpu_custom_call.1} parent=27 // pred_check
          %p334 = pneg %p77
        $region34: #{tpu_custom_call.1} parent=27 // pred_check_branch
          %336 = sbr.rel (%p334) target = $region36
        $region35: #{tpu_custom_call.1} parent=27 // pred_region
          %s337 = sand.u32 %s31, 1
          %s338 = scalar_lea.sflag [#allocation7], %s337
          %s339 = sand.u32 %s67, 1
          %s340 = smul.addr %s339, 16
          %s341 = scalar_lea.vmem [#allocation6], %s340
          %s342 = smul.u32 2, %s31
          %344 = vsyncadd %s338, 0
          %s345 = smul.addr %s342, 8
          %s346 = scalar_lea.hbm %s1, %s345
          %s347 = sshll.u32 %s346, 4
          %s348 = int_to_ptr.hbm [resolvable:$true] %s347
          %s349 = sshll.u32 %s341, 4
          %s350 = int_to_ptr.vmem [resolvable:$true] %s349
          %355 = dma.hbm_to_vmem [thread:$0]  %s348, 256, %s350, %s338, 128, 128, 8
        $region36: #{tpu_custom_call.1} parent=27 // pred_fallthru
          _
        // Predicated region
        $region37: #{tpu_custom_call.1} parent=27 // pred_check
          %p356 = pneg %p103
        $region38: #{tpu_custom_call.1} parent=27 // pred_check_branch
          %358 = sbr.rel (%p356) target = $region40
        $region39: #{tpu_custom_call.1} parent=27 // pred_region
          %s359 = sand.u32 %s31, 1
          %s360 = scalar_lea.sflag [#allocation7], %s359
          %s361 = sand.u32 %s93, 1
          %s362 = smul.addr %s361, 16
          %s363 = scalar_lea.vmem [#allocation8], %s362
          %s364 = smul.u32 2, %s31
          %366 = vsyncadd %s360, 0
          %s367 = smul.addr %s364, 8
          %s368 = scalar_lea.hbm %s2, %s367
          %s369 = sshll.u32 %s368, 4
          %s370 = int_to_ptr.hbm [resolvable:$true] %s369
          %s371 = sshll.u32 %s363, 4
          %s372 = int_to_ptr.vmem [resolvable:$true] %s371
          %377 = dma.hbm_to_vmem [thread:$0]  %s370, 256, %s372, %s360, 128, 128, 8
        $region40: #{tpu_custom_call.1} parent=27 // pred_fallthru
          _
        // Predicated region
        $region41: #{tpu_custom_call.1} parent=27 // pred_check
          %p378 = pneg %p129
        $region42: #{tpu_custom_call.1} parent=27 // pred_check_branch
          %380 = sbr.rel (%p378) target = $region44
        $region43: #{tpu_custom_call.1} parent=27 // pred_region
          %s381 = sand.u32 %s31, 1
          %s382 = scalar_lea.sflag [#allocation10], %s381
          %s383 = sand.u32 %s119, 1
          %s384 = smul.addr %s383, 8
          %s385 = scalar_lea.vmem [#allocation9], %s384
          %s386 = smul.u32 2, %s31
          %388 = vsyncadd %s382, 0
          %s389 = smul.addr %s386, 4
          %s390 = scalar_lea.hbm %s3, %s389
          %s391 = sshll.u32 %s390, 4
          %s392 = int_to_ptr.hbm [resolvable:$true] %s391
          %s393 = sshll.u32 %s385, 4
          %s394 = int_to_ptr.vmem [resolvable:$true] %s393
          %399 = dma.hbm_to_vmem [thread:$0]  %s392, 128, %s394, %s382, 64, 64, 4
        $region44: #{tpu_custom_call.1} parent=27 // pred_fallthru
          _
      $region28: #{tpu_custom_call.1} parent=5 // pred_fallthru
        _
      %p400 = scmp.le.s32.totalorder 1, %s31
      %p401 = scmp.lt.s32.totalorder %s31, 3
      %p402 = pnand %p400, %p401
      %p403 = pneg %p402
      // Predicated region
      $region45: #{tpu_custom_call.1} parent=5 // pred_check
        _
      $region46: #{tpu_custom_call.1} parent=5 // pred_check_branch
        %405 = sbr.rel (%p402) target = $region48
      $region47: #{tpu_custom_call.1} parent=5 // pred_region
        %s406 = ssub.s32 %s31, 1
        %s407 = sand.u32 %s44, 1
        %s408 = scalar_lea.sflag [#allocation4], %s407
        %s409 = sand.u32 %s44, 1
        %s410 = smul.addr %s409, 32
        %s411 = scalar_lea.vmem [#allocation3], %s410
        // Predicated region
        $region49: #{tpu_custom_call.1} parent=47 // pred_check
          %p412 = pneg %p57
        $region50: #{tpu_custom_call.1} parent=47 // pred_check_branch
          %414 = sbr.rel (%p412) target = $region52
        $region51: #{tpu_custom_call.1} parent=47 // pred_region
          %416 = dma.done %s408, 512
        $region52: #{tpu_custom_call.1} parent=47 // pred_fallthru
          _
        %s417 = sand.u32 %s36, 1
        %s418 = scalar_lea.sflag [#allocation7], %s417
        %s419 = sand.u32 %s70, 1
        %s420 = smul.addr %s419, 16
        %s421 = scalar_lea.vmem [#allocation6], %s420
        // Predicated region
        $region53: #{tpu_custom_call.1} parent=47 // pred_check
          %p422 = pneg %p83
        $region54: #{tpu_custom_call.1} parent=47 // pred_check_branch
          %424 = sbr.rel (%p422) target = $region56
        $region55: #{tpu_custom_call.1} parent=47 // pred_region
          %426 = dma.done %s418, 256
        $region56: #{tpu_custom_call.1} parent=47 // pred_fallthru
          _
        %s427 = sand.u32 %s36, 1
        %s428 = scalar_lea.sflag [#allocation7], %s427
        %s429 = sand.u32 %s96, 1
        %s430 = smul.addr %s429, 16
        %s431 = scalar_lea.vmem [#allocation8], %s430
        // Predicated region
        $region57: #{tpu_custom_call.1} parent=47 // pred_check
          %p432 = pneg %p109
        $region58: #{tpu_custom_call.1} parent=47 // pred_check_branch
          %434 = sbr.rel (%p432) target = $region60
        $region59: #{tpu_custom_call.1} parent=47 // pred_region
          %436 = dma.done %s428, 256
        $region60: #{tpu_custom_call.1} parent=47 // pred_fallthru
          _
        %s437 = sand.u32 %s36, 1
        %s438 = scalar_lea.sflag [#allocation10], %s437
        %s439 = sand.u32 %s122, 1
        %s440 = smul.addr %s439, 8
        %s441 = scalar_lea.vmem [#allocation9], %s440
        // Predicated region
        $region61: #{tpu_custom_call.1} parent=47 // pred_check
          %p442 = pneg %p135
        $region62: #{tpu_custom_call.1} parent=47 // pred_check_branch
          %444 = sbr.rel (%p442) target = $region64
        $region63: #{tpu_custom_call.1} parent=47 // pred_region
          %446 = dma.done %s438, 128
        $region64: #{tpu_custom_call.1} parent=47 // pred_fallthru
          _
        // Predicated region
        $region65: #{tpu_custom_call.1} parent=47 // pred_check
          %p447 = pneg %p156
        $region66: #{tpu_custom_call.1} parent=47 // pred_check_branch
          %449 = sbr.rel (%p447) target = $region68
        $region67: #{tpu_custom_call.1} parent=47 // pred_region
          %451 = dma.done [#allocation10], 1024
        $region68: #{tpu_custom_call.1} parent=47 // pred_fallthru
          _
        // Predicated region
        $region69: #{tpu_custom_call.1} parent=47 // pred_check
          %p452 = pneg %p177
        $region70: #{tpu_custom_call.1} parent=47 // pred_check_branch
          %454 = sbr.rel (%p452) target = $region72
        $region71: #{tpu_custom_call.1} parent=47 // pred_region
          %456 = dma.done [#allocation13], 1024
        $region72: #{tpu_custom_call.1} parent=47 // pred_fallthru
          _
        // Predicated region
        $region73: #{tpu_custom_call.1} parent=47 // pred_check
          %p457 = pneg %p198
        $region74: #{tpu_custom_call.1} parent=47 // pred_check_branch
          %459 = sbr.rel (%p457) target = $region76
        $region75: #{tpu_custom_call.1} parent=47 // pred_region
          %461 = dma.done [#allocation13], 1024
        $region76: #{tpu_custom_call.1} parent=47 // pred_fallthru
          _
        %s462 = sand.u32 %s44, 1
        %s463 = scalar_lea.sflag [#allocation4], %s462
        %s464 = sand.u32 %s44, 1
        %s465 = smul.addr %s464, 32
        %s466 = scalar_lea.vmem [#allocation3], %s465
        %p467 = pneg %p57
        %p468 = pneg %p54
        %s469 = sand.u32 %s36, 1
        %s470 = scalar_lea.sflag [#allocation7], %s469
        %s471 = sand.u32 %s70, 1
        %s472 = smul.addr %s471, 16
        %s473 = scalar_lea.vmem [#allocation6], %s472
        %p474 = pneg %p83
        %p475 = pneg %p80
        %s476 = sand.u32 %s36, 1
        %s477 = scalar_lea.sflag [#allocation7], %s476
        %s478 = sand.u32 %s96, 1
        %s479 = smul.addr %s478, 16
        %s480 = scalar_lea.vmem [#allocation8], %s479
        %p481 = pneg %p109
        %p482 = pneg %p106
        %s483 = sand.u32 %s36, 1
        %s484 = scalar_lea.sflag [#allocation10], %s483
        %s485 = sand.u32 %s122, 1
        %s486 = smul.addr %s485, 8
        %s487 = scalar_lea.vmem [#allocation9], %s486
        %p488 = pneg %p135
        %p489 = pneg %p132
        %p490 = pneg %p156
        %p491 = pneg %p153
        %p492 = pneg %p177
        %p493 = pneg %p174
        %p494 = pneg %p198
        %p495 = pneg %p195
        %p496 = pneg %p224
        %p497 = pneg %p221
        %s498 = sand.u32 %s211, 1
        %s499 = scalar_lea.sflag [#allocation5], %s498
        %s500 = sand.u32 %s211, 1
        %s501 = smul.addr %s500, 64
        %s502 = scalar_lea.vmem [#allocation15], %s501
        %p503 = pneg %p250
        %p504 = pneg %p247
        %s505 = sand.u32 %s237, 1
        %s506 = scalar_lea.sflag [#allocation17], %s505
        %s507 = sand.u32 %s237, 1
        %s508 = smul.addr %s507, 8
        %s509 = scalar_lea.vmem [#allocation16], %s508
        %s510 = smul.u32 2, %s36
        %s511 = smul.u32 2, %s36
        %s512 = smul.u32 2, %s36
        %s513 = smul.u32 2, %s36
        %s514 = smul.u32 2, %s36
        %s515 = smul.u32 2, %s36
        %v517 = vld [vmem:[%s411] sm:$0xff]
        %v518 = vld [vmem:[%s411 + $0x8] sm:$0xff]
        %v519 = vld [vmem:[%s411 + $0x10] sm:$0xff]
        %v520 = vld [vmem:[%s411 + $0x18] sm:$0xff]
        %v521 = vld [vmem:[%s421] sm:$0xff]
        %v522 = vld [vmem:[%s421 + $0x8] sm:$0xff]
        %v523 = vld [vmem:[%s431] sm:$0xff]
        %v524 = vld [vmem:[%s431 + $0x8] sm:$0xff]
        %525 = vst [vmem:[%s502] sm:$0xff] %v517
        %526 = vst [vmem:[%s502 + $0x8] sm:$0xff] %v518
        %527 = vst [vmem:[%s502 + $0x20] sm:$0xff] %v519
        %528 = vst [vmem:[%s502 + $0x28] sm:$0xff] %v520
        %529 = vst [vmem:[%s502 + $0x10] sm:$0xff] %v521
        %530 = vst [vmem:[%s502 + $0x30] sm:$0xff] %v522
        %531 = vst [vmem:[%s502 + $0x18] sm:$0xff] %v523
        %532 = vst [vmem:[%s502 + $0x38] sm:$0xff] %v524
        %v533 = vpack.c.bf16 %v517, %v517
        %v534 = vpack.c.bf16 %v518, %v518
        %v535 = vpack.c.bf16 %v519, %v519
        %v536 = vpack.c.bf16 %v520, %v520
        %537 = vst [vmem:[#allocation2] sm:$0xf] %v533
        %538 = vst [vmem:[#allocation2 + $0x4] sm:$0xf] %v534
        %539 = vst [vmem:[#allocation2 + $0x10] sm:$0xf] %v535
        %540 = vst [vmem:[#allocation2 + $0x14] sm:$0xf] %v536
        %v541 = vpack.c.bf16 %v521, %v521
        %v542 = vpack.c.bf16 %v522, %v522
        %543 = vst [vmem:[#allocation2 + $0x8] sm:$0xf] %v541
        %544 = vst [vmem:[#allocation2 + $0x18] sm:$0xf] %v542
        %v545 = vpack.c.bf16 %v523, %v523
        %v546 = vpack.c.bf16 %v524, %v524
        %547 = vst [vmem:[#allocation2 + $0xc] sm:$0xf] %v545
        %548 = vst [vmem:[#allocation2 + $0x1c] sm:$0xf] %v546
        %v549 = vld [vmem:[#allocation2] sm:$0xf]
        %v550 = vld [vmem:[#allocation2 + $0x4] sm:$0xf]
        %v551 = vld [vmem:[#allocation2 + $0x8] sm:$0xf]
        %v552 = vld [vmem:[#allocation2 + $0xc] sm:$0xf]
        %v553 = vld [vmem:[#allocation2 + $0x10] sm:$0xf]
        %v554 = vld [vmem:[#allocation2 + $0x14] sm:$0xf]
        %v555 = vld [vmem:[#allocation2 + $0x18] sm:$0xf]
        %v556 = vld [vmem:[#allocation2 + $0x1c] sm:$0xf]
        %v557 = vld [vmem:[%s441] sm:$0xf]
        %v558 = vld [vmem:[%s441 + $0x4] sm:$0xf]
        %v559 = vld [vmem:[#allocation11] sm:$0xf]
        %v560 = vld [vmem:[#allocation11 + $0x4] sm:$0xf]
        %v561 = vld [vmem:[#allocation11 + $0x8] sm:$0xf]
        %v562 = vld [vmem:[#allocation11 + $0xc] sm:$0xf]
        %v563 = vld [vmem:[#allocation11 + $0x10] sm:$0xf]
        %v564 = vld [vmem:[#allocation11 + $0x14] sm:$0xf]
        %v565 = vld [vmem:[#allocation11 + $0x18] sm:$0xf]
        %v566 = vld [vmem:[#allocation11 + $0x1c] sm:$0xf]
        %v567 = vld [vmem:[#allocation11 + $0x20] sm:$0xf]
        %v568 = vld [vmem:[#allocation11 + $0x24] sm:$0xf]
        %v569 = vld [vmem:[#allocation11 + $0x28] sm:$0xf]
        %v570 = vld [vmem:[#allocation11 + $0x2c] sm:$0xf]
        %v571 = vld [vmem:[#allocation11 + $0x30] sm:$0xf]
        %v572 = vld [vmem:[#allocation11 + $0x34] sm:$0xf]
        %v573 = vld [vmem:[#allocation11 + $0x38] sm:$0xf]
        %v574 = vld [vmem:[#allocation11 + $0x3c] sm:$0xf]
        %v577 = vunpack.c.l.b16 %v557
        %v578 = vunpack.c.l.b16 %v558
        %v579 = vpack.c.b16 %v578, %v577
        %v597 = vunpack.c.l.b16 %v559
        %v598 = vunpack.c.l.b16 %v560
        %v599 = vunpack.c.l.b16 %v561
        %v600 = vunpack.c.l.b16 %v562
        %v601 = vunpack.c.l.b16 %v563
        %v602 = vunpack.c.l.b16 %v564
        %v603 = vunpack.c.l.b16 %v565
        %v604 = vunpack.c.l.b16 %v566
        %v605 = vunpack.c.l.b16 %v567
        %v606 = vunpack.c.l.b16 %v568
        %v607 = vunpack.c.l.b16 %v569
        %v608 = vunpack.c.l.b16 %v570
        %v609 = vunpack.c.l.b16 %v571
        %v610 = vunpack.c.l.b16 %v572
        %v611 = vunpack.c.l.b16 %v573
        %v612 = vunpack.c.l.b16 %v574
        %v613 = vpack.c.b16 %v598, %v597
        %v614 = vpack.c.b16 %v600, %v599
        %v615 = vpack.c.b16 %v602, %v601
        %v616 = vpack.c.b16 %v604, %v603
        %v617 = vpack.c.b16 %v606, %v605
        %v618 = vpack.c.b16 %v608, %v607
        %v619 = vpack.c.b16 %v610, %v609
        %v620 = vpack.c.b16 %v612, %v611
        %629 = vmatpush.bf16.msra.mxu0 %v620
        %630 = vmatpush.bf16.msra.mxu0 %v619
        %631 = vmatpush.bf16.msra.mxu0 %v618
        %632 = vmatpush.bf16.msra.mxu0 %v617
        %633 = vmatpush.bf16.msra.mxu0 %v616
        %634 = vmatpush.bf16.msra.mxu0 %v615
        %635 = vmatpush.bf16.msra.mxu0 %v614
        %636 = vmatpush.bf16.msra.mxu0 %v613
        %637 = vmatmul.bf16.gmra.mxu0 %v579
        %v638 = vpop.f32.mrf.mxu0
        %v639 = vadd.f32 0.0, %v638
        %v640 = vpop.f32.mrf.mxu0
        %v641 = vadd.f32 0.0, %v640
        %642 = vdwg.mxu0
        %v643 = vld [vmem:[#allocation12] sm:$0xf]
        %v644 = vld [vmem:[#allocation12 + $0x4] sm:$0xf]
        %v645 = vld [vmem:[#allocation12 + $0x8] sm:$0xf]
        %v646 = vld [vmem:[#allocation12 + $0xc] sm:$0xf]
        %v647 = vld [vmem:[#allocation12 + $0x10] sm:$0xf]
        %v648 = vld [vmem:[#allocation12 + $0x14] sm:$0xf]
        %v649 = vld [vmem:[#allocation12 + $0x18] sm:$0xf]
        %v650 = vld [vmem:[#allocation12 + $0x1c] sm:$0xf]
        %v651 = vld [vmem:[#allocation12 + $0x20] sm:$0xf]
        %v652 = vld [vmem:[#allocation12 + $0x24] sm:$0xf]
        %v653 = vld [vmem:[#allocation12 + $0x28] sm:$0xf]
        %v654 = vld [vmem:[#allocation12 + $0x2c] sm:$0xf]
        %v655 = vld [vmem:[#allocation12 + $0x30] sm:$0xf]
        %v656 = vld [vmem:[#allocation12 + $0x34] sm:$0xf]
        %v657 = vld [vmem:[#allocation12 + $0x38] sm:$0xf]
        %v658 = vld [vmem:[#allocation12 + $0x3c] sm:$0xf]
        %v667 = vunpack.c.l.b16 %v549
        %v668 = vunpack.c.l.b16 %v550
        %v669 = vunpack.c.l.b16 %v551
        %v670 = vunpack.c.l.b16 %v552
        %v671 = vunpack.c.l.b16 %v553
        %v672 = vunpack.c.l.b16 %v554
        %v673 = vunpack.c.l.b16 %v555
        %v674 = vunpack.c.l.b16 %v556
        %v675 = vpack.c.b16 %v668, %v667
        %v676 = vpack.c.b16 %v670, %v669
        %v677 = vpack.c.b16 %v672, %v671
        %v678 = vpack.c.b16 %v674, %v673
        %v699 = vunpack.c.l.b16 %v643
        %v700 = vunpack.c.l.b16 %v644
        %v701 = vunpack.c.l.b16 %v645
        %v702 = vunpack.c.l.b16 %v646
        %v703 = vunpack.c.l.b16 %v647
        %v704 = vunpack.c.l.b16 %v648
        %v705 = vunpack.c.l.b16 %v649
        %v706 = vunpack.c.l.b16 %v650
        %v707 = vunpack.c.l.b16 %v651
        %v708 = vunpack.c.l.b16 %v652
        %v709 = vunpack.c.l.b16 %v653
        %v710 = vunpack.c.l.b16 %v654
        %v711 = vunpack.c.l.b16 %v655
        %v712 = vunpack.c.l.b16 %v656
        %v713 = vunpack.c.l.b16 %v657
        %v714 = vunpack.c.l.b16 %v658
        %v715 = vpack.c.b16 %v700, %v699
        %v716 = vpack.c.b16 %v702, %v701
        %v717 = vpack.c.b16 %v704, %v703
        %v718 = vpack.c.b16 %v706, %v705
        %v719 = vpack.c.b16 %v708, %v707
        %v720 = vpack.c.b16 %v710, %v709
        %v721 = vpack.c.b16 %v712, %v711
        %v722 = vpack.c.b16 %v714, %v713
        %731 = vmatpush.bf16.msra.mxu0 %v722
        %732 = vmatpush.bf16.msra.mxu0 %v721
        %733 = vmatpush.bf16.msra.mxu0 %v720
        %734 = vmatpush.bf16.msra.mxu0 %v719
        %735 = vmatpush.bf16.msra.mxu0 %v718
        %736 = vmatpush.bf16.msra.mxu0 %v717
        %737 = vmatpush.bf16.msra.mxu0 %v716
        %738 = vmatpush.bf16.msra.mxu0 %v715
        %739 = vmatmul.bf16.gmra.mxu0 %v675
        %v740 = vpop.f32.mrf.mxu0
        %v741 = vadd.f32 0.0, %v740
        %v742 = vpop.f32.mrf.mxu0
        %v743 = vadd.f32 0.0, %v742
        %744 = vmatmul.bf16.gmra.mxu0 %v676
        %v745 = vpop.f32.mrf.mxu0
        %v746 = vadd.f32 0.0, %v745
        %v747 = vpop.f32.mrf.mxu0
        %v748 = vadd.f32 0.0, %v747
        %749 = vmatmul.bf16.gmra.mxu0 %v677
        %v750 = vpop.f32.mrf.mxu0
        %v751 = vadd.f32 0.0, %v750
        %v752 = vpop.f32.mrf.mxu0
        %v753 = vadd.f32 0.0, %v752
        %754 = vmatmul.bf16.gmra.mxu0 %v678
        %v755 = vpop.f32.mrf.mxu0
        %v756 = vadd.f32 0.0, %v755
        %v757 = vpop.f32.mrf.mxu0
        %v758 = vadd.f32 0.0, %v757
        %759 = vdwg.mxu0
        %v760 = vld [vmem:[#allocation14] sm:$0xf]
        %v761 = vld [vmem:[#allocation14 + $0x4] sm:$0xf]
        %v762 = vld [vmem:[#allocation14 + $0x8] sm:$0xf]
        %v763 = vld [vmem:[#allocation14 + $0xc] sm:$0xf]
        %v764 = vld [vmem:[#allocation14 + $0x10] sm:$0xf]
        %v765 = vld [vmem:[#allocation14 + $0x14] sm:$0xf]
        %v766 = vld [vmem:[#allocation14 + $0x18] sm:$0xf]
        %v767 = vld [vmem:[#allocation14 + $0x1c] sm:$0xf]
        %v768 = vld [vmem:[#allocation14 + $0x20] sm:$0xf]
        %v769 = vld [vmem:[#allocation14 + $0x24] sm:$0xf]
        %v770 = vld [vmem:[#allocation14 + $0x28] sm:$0xf]
        %v771 = vld [vmem:[#allocation14 + $0x2c] sm:$0xf]
        %v772 = vld [vmem:[#allocation14 + $0x30] sm:$0xf]
        %v773 = vld [vmem:[#allocation14 + $0x34] sm:$0xf]
        %v774 = vld [vmem:[#allocation14 + $0x38] sm:$0xf]
        %v775 = vld [vmem:[#allocation14 + $0x3c] sm:$0xf]
        %v792 = vunpack.c.l.b16 %v760
        %v793 = vunpack.c.l.b16 %v761
        %v794 = vunpack.c.l.b16 %v762
        %v795 = vunpack.c.l.b16 %v763
        %v796 = vunpack.c.l.b16 %v764
        %v797 = vunpack.c.l.b16 %v765
        %v798 = vunpack.c.l.b16 %v766
        %v799 = vunpack.c.l.b16 %v767
        %v800 = vunpack.c.l.b16 %v768
        %v801 = vunpack.c.l.b16 %v769
        %v802 = vunpack.c.l.b16 %v770
        %v803 = vunpack.c.l.b16 %v771
        %v804 = vunpack.c.l.b16 %v772
        %v805 = vunpack.c.l.b16 %v773
        %v806 = vunpack.c.l.b16 %v774
        %v807 = vunpack.c.l.b16 %v775
        %v808 = vpack.c.b16 %v793, %v792
        %v809 = vpack.c.b16 %v795, %v794
        %v810 = vpack.c.b16 %v797, %v796
        %v811 = vpack.c.b16 %v799, %v798
        %v812 = vpack.c.b16 %v801, %v800
        %v813 = vpack.c.b16 %v803, %v802
        %v814 = vpack.c.b16 %v805, %v804
        %v815 = vpack.c.b16 %v807, %v806
        %824 = vmatpush.bf16.msra.mxu0 %v815
        %825 = vmatpush.bf16.msra.mxu0 %v814
        %826 = vmatpush.bf16.msra.mxu0 %v813
        %827 = vmatpush.bf16.msra.mxu0 %v812
        %828 = vmatpush.bf16.msra.mxu0 %v811
        %829 = vmatpush.bf16.msra.mxu0 %v810
        %830 = vmatpush.bf16.msra.mxu0 %v809
        %831 = vmatpush.bf16.msra.mxu0 %v808
        %832 = vmatmul.bf16.gmra.mxu0 %v675
        %v833 = vpop.f32.mrf.mxu0
        %v834 = vadd.f32 0.0, %v833
        %v835 = vpop.f32.mrf.mxu0
        %v836 = vadd.f32 0.0, %v835
        %837 = vmatmul.bf16.gmra.mxu0 %v676
        %v838 = vpop.f32.mrf.mxu0
        %v839 = vadd.f32 0.0, %v838
        %v840 = vpop.f32.mrf.mxu0
        %v841 = vadd.f32 0.0, %v840
        %842 = vmatmul.bf16.gmra.mxu0 %v677
        %v843 = vpop.f32.mrf.mxu0
        %v844 = vadd.f32 0.0, %v843
        %v845 = vpop.f32.mrf.mxu0
        %v846 = vadd.f32 0.0, %v845
        %847 = vmatmul.bf16.gmra.mxu0 %v678
        %v848 = vpop.f32.mrf.mxu0
        %v849 = vadd.f32 0.0, %v848
        %v850 = vpop.f32.mrf.mxu0
        %v851 = vadd.f32 0.0, %v850
        %852 = vdwg.mxu0
        %v853 = vpack.c.bf16 %v639, %v639
        %v854 = vpack.c.bf16 %v641, %v641
        %v855 = vpack.c.bf16 %v741, %v741
        %v856 = vpack.c.bf16 %v743, %v743
        %v857 = vpack.c.bf16 %v746, %v746
        %v858 = vpack.c.bf16 %v748, %v748
        %v859 = vpack.c.bf16 %v751, %v751
        %v860 = vpack.c.bf16 %v753, %v753
        %v861 = vpack.c.bf16 %v756, %v756
        %v862 = vpack.c.bf16 %v758, %v758
        %v863 = vpack.c.bf16 %v834, %v834
        %v864 = vpack.c.bf16 %v836, %v836
        %v865 = vpack.c.bf16 %v839, %v839
        %v866 = vpack.c.bf16 %v841, %v841
        %v867 = vpack.c.bf16 %v844, %v844
        %v868 = vpack.c.bf16 %v846, %v846
        %v869 = vpack.c.bf16 %v849, %v849
        %v870 = vpack.c.bf16 %v851, %v851
        %v875 = vunpack.c.l.b16 %v855
        %v876 = vunpack.c.l.b16 %v856
        %v877 = vunpack.c.l.b16 %v857
        %v878 = vunpack.c.l.b16 %v858
        %v879 = vpack.c.b16 %v876, %v875
        %v880 = vpack.c.b16 %v878, %v877
        %883 = vmatpush.bf16.xpose.msra.mxu0 0
        %884 = vmatpush.bf16.xpose.msra.mxu0 0
        %885 = vmatpush.bf16.xpose.msra.mxu0 0
        %886 = vmatpush.bf16.xpose.msra.mxu0 0
        %887 = vmatpush.bf16.xpose.msra.mxu0 0
        %888 = vmatpush.bf16.xpose.msra.mxu0 0
        %889 = vmatpush.bf16.xpose.msra.mxu0 %v880
        %890 = vmatpush.bf16.xpose.msra.mxu0 %v879
        %891 = vmatmul.bf16.gmra.mxu0 %v853
        %v892 = vpop.f32.mrf.mxu0
        %v893 = vadd.f32 0.0, %v892
        %v894 = vpop.f32.mrf.mxu0
        %895 = vdwg.mxu0
        %v900 = vunpack.c.l.b16 %v859
        %v901 = vunpack.c.l.b16 %v860
        %v902 = vunpack.c.l.b16 %v861
        %v903 = vunpack.c.l.b16 %v862
        %v904 = vpack.c.b16 %v901, %v900
        %v905 = vpack.c.b16 %v903, %v902
        %908 = vmatpush.bf16.xpose.msra.mxu0 0
        %909 = vmatpush.bf16.xpose.msra.mxu0 0
        %910 = vmatpush.bf16.xpose.msra.mxu0 0
        %911 = vmatpush.bf16.xpose.msra.mxu0 0
        %912 = vmatpush.bf16.xpose.msra.mxu0 0
        %913 = vmatpush.bf16.xpose.msra.mxu0 0
        %914 = vmatpush.bf16.xpose.msra.mxu0 %v905
        %915 = vmatpush.bf16.xpose.msra.mxu0 %v904
        %916 = vmatmul.bf16.gmra.mxu0 %v854
        %v917 = vpop.f32.mrf.mxu0
        %v918 = vadd.f32 0.0, %v917
        %v919 = vpop.f32.mrf.mxu0
        %920 = vdwg.mxu0
        %v921 = vmul.f32 %v893, 0.088388346
        %v922 = vmul.f32 %v918, 0.088388346
        %vm923 = vcmask 261120
        %v924 = vsel %vm923, %v921, -inf
        %925 = vmax.xlane.f32.xlu0 %v924
        %v926 = vpop.xlane.xlu0 %925
        %v927 = vsel %vm923, %v922, -inf
        %928 = vmax.xlane.f32.xlu0 %v927
        %v929 = vpop.xlane.xlu0 %928
        %v930 = vsub.f32 %v921, %v926
        %v931 = vsub.f32 %v922, %v929
        %v932 = vmul.f32 %v930, 1.442695
        %v933 = vpow.pop %v932
        %v934 = vmul.f32 %v931, 1.442695
        %v935 = vpow.pop %v934
        %v936 = vsel %vm923, %v933, 0.0
        %937 = vadd.xlane.f32.xlu0 %v936
        %v938 = vpop.xlane.xlu0 %937
        %v939 = vsel %vm923, %v935, 0.0
        %940 = vadd.xlane.f32.xlu0 %v939
        %v941 = vpop.xlane.xlu0 %940
        %v942 = vrcp.pop %v938
        %v943 = vmul.f32 %v938, %v942
        %v944 = vsub.f32 1.0, %v943
        %v945 = vmul.f32 %v942, %v944
        %v946 = vadd.f32 %v942, %v945
        %vm947 = vweird.f32 %v938
        %vm948 = vweird.f32 %v942
        %vm949 = vmor %vm947, %vm948
        %v950 = vsel %vm949, %v942, %v946
        %v951 = vand.u32 2147483647, %v938
        %vm952 = vcmp.eq.f32.partialorder %v951, 8.507059e+37
        %v953 = vand.u32 %v938, 2147483648
        %v954 = vor.u32 1.1754944e-38, %v953
        %v955 = vsel %vm952, %v954, %v950
        %v956 = vrcp.pop %v941
        %v957 = vmul.f32 %v941, %v956
        %v958 = vsub.f32 1.0, %v957
        %v959 = vmul.f32 %v956, %v958
        %v960 = vadd.f32 %v956, %v959
        %vm961 = vweird.f32 %v941
        %vm962 = vweird.f32 %v956
        %vm963 = vmor %vm961, %vm962
        %v964 = vsel %vm963, %v956, %v960
        %v965 = vand.u32 2147483647, %v941
        %vm966 = vcmp.eq.f32.partialorder %v965, 8.507059e+37
        %v967 = vand.u32 %v941, 2147483648
        %v968 = vor.u32 1.1754944e-38, %v967
        %v969 = vsel %vm966, %v968, %v964
        %v970 = vmul.f32 %v933, %v955
        %v971 = vmul.f32 %v935, %v969
        %v972 = vpack.c.bf16 %v970, %v970
        %v973 = vpack.c.bf16 %v971, %v971
        %v978 = vunpack.c.l.b16 %v863
        %v979 = vunpack.c.l.b16 %v864
        %v980 = vunpack.c.l.b16 %v865
        %v981 = vunpack.c.l.b16 %v866
        %v982 = vpack.c.b16 %v979, %v978
        %v983 = vpack.c.b16 %v981, %v980
        %v987 = vsel %vm923, %v972, 0
        %989 = vmatpush.bf16.msra.mxu0 0
        %990 = vmatpush.bf16.msra.mxu0 0
        %991 = vmatpush.bf16.msra.mxu0 0
        %992 = vmatpush.bf16.msra.mxu0 0
        %993 = vmatpush.bf16.msra.mxu0 0
        %994 = vmatpush.bf16.msra.mxu0 0
        %995 = vmatpush.bf16.msra.mxu0 %v983
        %996 = vmatpush.bf16.msra.mxu0 %v982
        %997 = vmatmul.bf16.gmra.mxu0 %v987
        %v998 = vpop.f32.mrf.mxu0
        %v999 = vadd.f32 0.0, %v998
        %v1000 = vpop.f32.mrf.mxu0
        %1001 = vdwg.mxu0
        %v1006 = vunpack.c.l.b16 %v867
        %v1007 = vunpack.c.l.b16 %v868
        %v1008 = vunpack.c.l.b16 %v869
        %v1009 = vunpack.c.l.b16 %v870
        %v1010 = vpack.c.b16 %v1007, %v1006
        %v1011 = vpack.c.b16 %v1009, %v1008
        %v1015 = vsel %vm923, %v973, 0
        %1017 = vmatpush.bf16.msra.mxu0 0
        %1018 = vmatpush.bf16.msra.mxu0 0
        %1019 = vmatpush.bf16.msra.mxu0 0
        %1020 = vmatpush.bf16.msra.mxu0 0
        %1021 = vmatpush.bf16.msra.mxu0 0
        %1022 = vmatpush.bf16.msra.mxu0 0
        %1023 = vmatpush.bf16.msra.mxu0 %v1011
        %1024 = vmatpush.bf16.msra.mxu0 %v1010
        %1025 = vmatmul.bf16.gmra.mxu0 %v1015
        %v1026 = vpop.f32.mrf.mxu0
        %v1027 = vadd.f32 0.0, %v1026
        %v1028 = vpop.f32.mrf.mxu0
        %1029 = vdwg.mxu0
        %v1030 = vpack.c.bf16 %v999, %v999
        %v1031 = vpack.c.bf16 %v1027, %v1027
        %1032 = vst [vmem:[%s509] sm:$0xf] %v1030
        %1033 = vst [vmem:[%s509 + $0x4] sm:$0xf] %v1031
        %s1034 = sand.u32 %s211, 1
        %s1035 = scalar_lea.sflag [#allocation5], %s1034
        %s1036 = sand.u32 %s211, 1
        %s1037 = smul.addr %s1036, 64
        %s1038 = scalar_lea.vmem [#allocation15], %s1037
        %s1039 = sand.u32 %s237, 1
        %s1040 = scalar_lea.sflag [#allocation17], %s1039
        %s1041 = sand.u32 %s237, 1
        %s1042 = smul.addr %s1041, 8
        %s1043 = scalar_lea.vmem [#allocation16], %s1042
        // Predicated region
        $region77: #{tpu_custom_call.1} parent=47 // pred_check
          %p1044 = pneg %p221
        $region78: #{tpu_custom_call.1} parent=47 // pred_check_branch
          %1046 = sbr.rel (%p1044) target = $region80
        $region79: #{tpu_custom_call.1} parent=47 // pred_region
          %s1047 = smul.u32 2, %s36
          %1049 = vsyncadd %s1035, 0
          %s1050 = smul.addr %s1047, 4
          %s1051 = smul.addr %s1050, 8
          %s1052 = scalar_lea.hbm %s7, %s1051
          %s1053 = sshll.u32 %s1038, 4
          %s1054 = int_to_ptr.vmem [resolvable:$true] %s1053
          %s1055 = sshll.u32 %s1052, 4
          %s1056 = int_to_ptr.hbm [resolvable:$true] %s1055
          %1061 = dma.vmem_to_hbm [thread:$0]  %s1054, 1024, %s1056, %s1035, 128, 128, 8
        $region80: #{tpu_custom_call.1} parent=47 // pred_fallthru
          _
        // Predicated region
        $region81: #{tpu_custom_call.1} parent=47 // pred_check
          %p1062 = pneg %p247
        $region82: #{tpu_custom_call.1} parent=47 // pred_check_branch
          %1064 = sbr.rel (%p1062) target = $region84
        $region83: #{tpu_custom_call.1} parent=47 // pred_region
          %s1065 = smul.u32 2, %s36
          %1067 = vsyncadd %s1040, 0
          %s1068 = smul.addr %s1065, 4
          %s1069 = scalar_lea.hbm %s8, %s1068
          %s1070 = sshll.u32 %s1043, 4
          %s1071 = int_to_ptr.vmem [resolvable:$true] %s1070
          %s1072 = sshll.u32 %s1069, 4
          %s1073 = int_to_ptr.hbm [resolvable:$true] %s1072
          %1078 = dma.vmem_to_hbm [thread:$0]  %s1071, 128, %s1073, %s1040, 64, 64, 4
        $region84: #{tpu_custom_call.1} parent=47 // pred_fallthru
          _
      $region48: #{tpu_custom_call.1} parent=5 // pred_fallthru
        _
      %p1079 = scmp.le.s32.totalorder 2, %s31
      // Predicated region
      $region85: #{tpu_custom_call.1} parent=5 // pred_check
        %p1080 = pneg %p1079
      $region86: #{tpu_custom_call.1} parent=5 // pred_check_branch
        %1082 = sbr.rel (%p1080) target = $region88
      $region87: #{tpu_custom_call.1} parent=5 // pred_region
        %s1083 = ssub.s32 %s31, 2
        // Predicated region
        $region89: #{tpu_custom_call.1} parent=87 // pred_check
          %p1084 = pneg %p227
        $region90: #{tpu_custom_call.1} parent=87 // pred_check_branch
          %1086 = sbr.rel (%p1084) target = $region92
        $region91: #{tpu_custom_call.1} parent=87 // pred_region
          %s1087 = sand.u32 %s212, 1
          %s1088 = scalar_lea.sflag [#allocation5], %s1087
          %s1089 = sand.u32 %s212, 1
          %s1090 = smul.addr %s1089, 64
          %s1091 = scalar_lea.vmem [#allocation15], %s1090
          %1093 = dma.done %s1088, 1024
        $region92: #{tpu_custom_call.1} parent=87 // pred_fallthru
          _
        // Predicated region
        $region93: #{tpu_custom_call.1} parent=87 // pred_check
          %p1094 = pneg %p253
        $region94: #{tpu_custom_call.1} parent=87 // pred_check_branch
          %1096 = sbr.rel (%p1094) target = $region96
        $region95: #{tpu_custom_call.1} parent=87 // pred_region
          %s1097 = sand.u32 %s238, 1
          %s1098 = scalar_lea.sflag [#allocation17], %s1097
          %s1099 = sand.u32 %s238, 1
          %s1100 = smul.addr %s1099, 8
          %s1101 = scalar_lea.vmem [#allocation16], %s1100
          %1103 = dma.done %s1098, 128
        $region96: #{tpu_custom_call.1} parent=87 // pred_fallthru
          _
      $region88: #{tpu_custom_call.1} parent=5 // pred_fallthru
        _
    $region6: #{tpu_custom_call.1} parent=1 // loop_footer
      %s35 = sadd.s32 1, %s31
    $region7: #{tpu_custom_call.1} parent=1 // loop_footer_branch
      %30 = sbr.rel target = $region3
    $region8: #{tpu_custom_call.1} parent=1 // loop_exit
      _
    %1104 = vsyncpa [#allocation4], 1
    %s1105 = scalar_lea.sflag [#allocation4], 1
    %1106 = vsyncpa %s1105, 1
    %1107 = vsyncpa [#allocation7], 1
    %s1108 = scalar_lea.sflag [#allocation7], 1
    %1109 = vsyncpa %s1108, 1
    %1110 = vsyncpa [#allocation10], 1
    %s1111 = scalar_lea.sflag [#allocation10], 1
    %1112 = vsyncpa %s1111, 1
    %1113 = vsyncpa [#allocation13], 1
    %1114 = vsyncpa [#allocation5], 1
    %s1115 = scalar_lea.sflag [#allocation5], 1
    %1116 = vsyncpa %s1115, 1
    %1117 = vsyncpa [#allocation17], 1
    %s1118 = scalar_lea.sflag [#allocation17], 1
    %1119 = vsyncpa %s1118, 1

</llo_original>
